<compile_context>
chip_gen: v7x
topology: tpu7x:2x2x1
jax: 0.10.0
libtpu: 0.0.40
codegen_flags: <defaults>
</compile_context>

<pallas_src>
import functools
import math

import jax
import jax.numpy as jnp
from jax.experimental import pallas as pl
from jax.experimental.pallas import tpu as pltpu


# ---------------------------------------------------------------------------
# Fused kernel: 2-layer LSTM wavefront recurrence + Linear head.
# ---------------------------------------------------------------------------
def _fused_rnn_kernel(x_ref, slab_ref, out_ref, *,
                      batch, hidden, input_size, out_size, out_step):
    B, H, D, O = batch, hidden, input_size, out_size
    T = out_step + 1          # timesteps that influence hidden_seq[out_step]

    # ---- static row offsets inside the packed weight slab (all 8-aligned) --
    r_wih0 = 0                 # (D , 4H)  layer-0 input weights
    r_wm   = D                 # (2H, 8H)  merged wavefront RHS
    r_who  = D + 2 * H         # (H , O )  h2o weights
    r_bias = D + 3 * H         # row: b0 | b1
    r_bho  = r_bias + 1        # row: b_h2o

    # Hoist all slab loads out of the recurrence (single reads, not per-step).
    w_ih0    = slab_ref[r_wih0:r_wih0 + D, :4 * H]          # (D, 4H)
    w_merged = slab_ref[r_wm:r_wm + 2 * H, :]                # (2H, 8H)
    w_ho     = slab_ref[r_who:r_who + H, :O]                 # (H, O)
    b0       = slab_ref[r_bias:r_bias + 1, :4 * H]           # (1, 4H)
    b1       = slab_ref[r_bias:r_bias + 1, 4 * H:]           # (1, 4H)
    b_ho     = slab_ref[r_bho:r_bho + 1, :O]                 # (1, O)

    def cell(gates, c):
        # gate columns pre-permuted to (i, f, o, g):
        #   one sigmoid over (B, 3H), one tanh over (B, H)  -> 2 EUP pushes.
        sig = jax.nn.sigmoid(gates[:, :3 * H])
        g = jnp.tanh(gates[:, 3 * H:])
        i = sig[:, :H]
        f = sig[:, H:2 * H]
        o = sig[:, 2 * H:3 * H]
        c_new = f * c + i * g
        h_new = o * jnp.tanh(c_new)
        return h_new, c_new

    # ---- layer-0 input projection hoisted over all T needed timesteps ------
    xproj0 = (jnp.dot(x_ref[...], w_ih0,
                      preferred_element_type=jnp.float32) + b0)   # (T*B, 4H)

    # ---- wave 0: layer-0 step 0 (h_{-1}=0 -> recurrent term vanishes) ------
    h0, c0 = cell(xproj0[:B, :], jnp.zeros((B, H), jnp.float32))
    h1 = jnp.zeros((B, H), jnp.float32)
    c1 = jnp.zeros((B, H), jnp.float32)

    # ---- waves 1..T: one merged (B,2H)x(2H,8H) MXU matmul per wave ---------
    #   result[:, :4H]  = h0_{w-1} @ Whh0                      -> layer-0 gates, step w
    #   result[:, 4H:]  = h0_{w-1} @ Wih1 + h1_{w-2} @ Whh1    -> layer-1 gates, step w-1
    for w in range(1, T + 1):          # static, fully unrolled (T = 5)
        lhs = jnp.concatenate([h0, h1], axis=1)                 # (B, 2H)
        gates_all = jnp.dot(lhs, w_merged,
                            preferred_element_type=jnp.float32)  # (B, 8H)
        # layer-1 step w-1
        h1, c1 = cell(gates_all[:, 4 * H:] + b1, c1)
        if w < T:
            # layer-0 step w
            h0, c0 = cell(gates_all[:, :4 * H] + xproj0[w * B:(w + 1) * B, :],
                          c0)

    # ---- h2o linear on hidden_seq[out_step] (== final h1) ------------------
    out_ref[...] = (jnp.dot(h1, w_ho, preferred_element_type=jnp.float32)
                    + b_ho)


def rnn_forward(x, slab, *, input_size, hidden, output_size, out_step=4):
    """x: (seq, B, D) time-major (PyTorch nn.LSTM default, batch_first=False)."""
    seq, B, D = x.shape
    assert D == input_size
    assert out_step < seq, "module indexes hidden[4]; need seq >= 5"
    T = out_step + 1

    # Only the first T timesteps can influence hidden_seq[out_step].
    x2d = x[:T].reshape(T * B, D)

    kernel = functools.partial(_fused_rnn_kernel, batch=B, hidden=hidden,
                               input_size=D, out_size=output_size,
                               out_step=out_step)
    return pl.pallas_call(
        kernel,
        out_shape=jax.ShapeDtypeStruct((B, output_size), jnp.float32),
        in_specs=[pl.BlockSpec(x2d.shape, lambda: (0, 0)),
                  pl.BlockSpec(slab.shape, lambda: (0, 0))],
        out_specs=pl.BlockSpec((B, output_size), lambda: (0, 0)),
    )(x2d, slab)


# ---------------------------------------------------------------------------
# Parameters in PyTorch convention (gate order i, f, g, o), then a one-time
# offline transform into the single packed kernel slab.
# ---------------------------------------------------------------------------
def make_params(key, input_size, hidden, output_size):
    ks = jax.random.split(key, 10)
    s = 1.0 / math.sqrt(hidden)
    u = lambda k, shape: jax.random.uniform(k, shape, jnp.float32, -s, s)
    return {
        # layer 0
        "w_ih_l0": u(ks[0], (4 * hidden, input_size)),
        "w_hh_l0": u(ks[1], (4 * hidden, hidden)),
        "b_ih_l0": u(ks[2], (4 * hidden,)),
        "b_hh_l0": u(ks[3], (4 * hidden,)),
        # layer 1 (its input is layer 0's hidden)
        "w_ih_l1": u(ks[4], (4 * hidden, hidden)),
        "w_hh_l1": u(ks[5], (4 * hidden, hidden)),
        "b_ih_l1": u(ks[6], (4 * hidden,)),
        "b_hh_l1": u(ks[7], (4 * hidden,)),
        # h2o linear
        "w_h2o": u(ks[8], (output_size, hidden)),
        "b_h2o": u(ks[9], (output_size,)),
    }


def prepare_kernel_slab(p, input_size, hidden, output_size):
    """Transpose, fuse biases, permute gates (i,f,g,o)->(i,f,o,g), and pack
    all weights/biases into one (rows, 8H) f32 slab (single prologue DMA)."""
    H, D, O = hidden, input_size, output_size
    perm = jnp.concatenate([
        jnp.arange(0 * H, 1 * H),   # i
        jnp.arange(1 * H, 2 * H),   # f
        jnp.arange(3 * H, 4 * H),   # o
        jnp.arange(2 * H, 3 * H),   # g
    ])
    gates_t = lambda w: w.T[:, perm]                       # (4H,K) -> (K,4H)

    w_ih0 = gates_t(p["w_ih_l0"])                          # (D, 4H)
    w_hh0 = gates_t(p["w_hh_l0"])                          # (H, 4H)
    w_ih1 = gates_t(p["w_ih_l1"])                          # (H, 4H)
    w_hh1 = gates_t(p["w_hh_l1"])                          # (H, 4H)
    b0 = (p["b_ih_l0"] + p["b_hh_l0"])[perm]               # (4H,)
    b1 = (p["b_ih_l1"] + p["b_hh_l1"])[perm]               # (4H,)
    w_ho = p["w_h2o"].T                                    # (H, O)
    b_ho = p["b_h2o"]                                      # (O,)

    rows = D + 3 * H + 2
    rows_padded = ((rows + 7) // 8) * 8                    # sublane-friendly
    slab = jnp.zeros((rows_padded, 8 * H), jnp.float32)
    # layer-0 input weights
    slab = slab.at[0:D, :4 * H].set(w_ih0)
    # merged wavefront RHS: [[Whh0, Wih1], [0, Whh1]]  -> (2H, 8H)
    slab = slab.at[D:D + H, :4 * H].set(w_hh0)
    slab = slab.at[D:D + H, 4 * H:].set(w_ih1)
    slab = slab.at[D + H:D + 2 * H, 4 * H:].set(w_hh1)
    # h2o weights
    slab = slab.at[D + 2 * H:D + 3 * H, :O].set(w_ho)
    # biases: one row b0|b1, one row b_h2o
    slab = slab.at[D + 3 * H, :4 * H].set(b0)
    slab = slab.at[D + 3 * H, 4 * H:].set(b1)
    slab = slab.at[D + 3 * H + 1, :O].set(b_ho)
    return slab


# ---------------------------------------------------------------------------
# Pure-JAX reference in PyTorch convention / gate order (correctness check).
# ---------------------------------------------------------------------------
def _ref_lstm_layer(x, w_ih, w_hh, b_ih, b_hh, hidden):
    seq, B, _ = x.shape
    h = jnp.zeros((B, hidden), jnp.float32)
    c = jnp.zeros((B, hidden), jnp.float32)
    outs = []
    for t in range(seq):
        gates = x[t] @ w_ih.T + h @ w_hh.T + b_ih + b_hh
        i = jax.nn.sigmoid(gates[:, 0 * hidden:1 * hidden])
        f = jax.nn.sigmoid(gates[:, 1 * hidden:2 * hidden])
        g = jnp.tanh(gates[:, 2 * hidden:3 * hidden])
        o = jax.nn.sigmoid(gates[:, 3 * hidden:4 * hidden])
        c = f * c + i * g
        h = o * jnp.tanh(c)
        outs.append(h)
    return jnp.stack(outs, axis=0)


def _ref_forward(x, p, hidden):
    h1 = _ref_lstm_layer(x, p["w_ih_l0"], p["w_hh_l0"],
                         p["b_ih_l0"], p["b_hh_l0"], hidden)
    h2 = _ref_lstm_layer(h1, p["w_ih_l1"], p["w_hh_l1"],
                         p["b_ih_l1"], p["b_hh_l1"], hidden)
    return h2[4] @ p["w_h2o"].T + p["b_h2o"]


if __name__ == "__main__":
    SEQ, BATCH = 8, 8
    INPUT_SIZE, HIDDEN, OUTPUT_SIZE = 16, 32, 8

    key = jax.random.PRNGKey(0)
    kx, kp = jax.random.split(key)
    x = jax.random.normal(kx, (SEQ, BATCH, INPUT_SIZE), jnp.float32)

    torch_params = make_params(kp, INPUT_SIZE, HIDDEN, OUTPUT_SIZE)
    slab = prepare_kernel_slab(torch_params, INPUT_SIZE, HIDDEN, OUTPUT_SIZE)

    out = rnn_forward(x, slab, input_size=INPUT_SIZE, hidden=HIDDEN,
                      output_size=OUTPUT_SIZE, out_step=4)
    out = jax.block_until_ready(out)

    ref = _ref_forward(x, torch_params, HIDDEN)
    assert out.shape == (BATCH, OUTPUT_SIZE)
    assert jnp.allclose(out, ref, atol=1e-4, rtol=1e-4), "mismatch vs reference"

    print("KERNEL_OK")
</pallas_src>

<mosaic_0001>
module attributes {stable_mosaic.version = 11 : i64} {
  func.func @_fused_rnn_kernel(%arg0: memref<40x16xf32, #tpu.memory_space<vmem>>, %arg1: memref<120x256xf32, #tpu.memory_space<vmem>>, %arg2: memref<8x8xf32, #tpu.memory_space<vmem>>) attributes {dimension_semantics = [], scalar_prefetch = 0 : i64, scratch_operands = 0 : i64, tpu.core_type = #tpu.core_type<tc>} {
    %c0 = arith.constant 0 : index
    %c0_0 = arith.constant 0 : index
    %0 = vector.load %arg1[%c0, %c0_0] : memref<120x256xf32, #tpu.memory_space<vmem>>, vector<16x128xf32>
    %c16 = arith.constant 16 : index
    %c0_1 = arith.constant 0 : index
    %1 = vector.load %arg1[%c16, %c0_1] : memref<120x256xf32, #tpu.memory_space<vmem>>, vector<64x256xf32>
    %c80 = arith.constant 80 : index
    %c0_2 = arith.constant 0 : index
    %2 = vector.load %arg1[%c80, %c0_2] : memref<120x256xf32, #tpu.memory_space<vmem>>, vector<32x8xf32>
    %c112 = arith.constant 112 : index
    %c0_3 = arith.constant 0 : index
    %3 = vector.load %arg1[%c112, %c0_3] : memref<120x256xf32, #tpu.memory_space<vmem>>, vector<1x128xf32>
    %c112_4 = arith.constant 112 : index
    %c128 = arith.constant 128 : index
    %4 = vector.load %arg1[%c112_4, %c128] : memref<120x256xf32, #tpu.memory_space<vmem>>, vector<1x128xf32>
    %c113 = arith.constant 113 : index
    %c0_5 = arith.constant 0 : index
    %5 = vector.load %arg1[%c113, %c0_5] : memref<120x256xf32, #tpu.memory_space<vmem>>, vector<1x8xf32>
    %c0_6 = arith.constant 0 : index
    %c0_7 = arith.constant 0 : index
    %6 = vector.load %arg0[%c0_6, %c0_7] : memref<40x16xf32, #tpu.memory_space<vmem>>, vector<40x16xf32>
    %cst = arith.constant dense<0.000000e+00> : vector<40x128xf32>
    %7 = tpu.matmul %6, %0, %cst {dimension_numbers = #tpu.dot_dimension_numbers<[1], [0], [0], [1], [0, 0, 1, 1], [], []>} : vector<40x16xf32>, vector<16x128xf32>, vector<40x128xf32> -> vector<40x128xf32>
    %8 = vector.broadcast %3 : vector<1x128xf32> to vector<40x128xf32>
    %9 = arith.addf %7, %8 : vector<40x128xf32>
    %10 = vector.extract_strided_slice %9 {offsets = [0, 0], sizes = [8, 128], strides = [1, 1]} : vector<40x128xf32> to vector<8x128xf32>
    %cst_8 = arith.constant 0.000000e+00 : f32
    %11 = vector.broadcast %cst_8 : f32 to vector<8x32xf32>
    %12 = vector.extract_strided_slice %10 {offsets = [0, 0], sizes = [8, 96], strides = [1, 1]} : vector<8x128xf32> to vector<8x96xf32>
    %13 = arith.negf %12 : vector<8x96xf32>
    %14 = math.exp %13 : vector<8x96xf32>
    %cst_9 = arith.constant 1.000000e+00 : f32
    %15 = vector.broadcast %cst_9 : f32 to vector<8x96xf32>
    %16 = arith.addf %15, %14 : vector<8x96xf32>
    %17 = arith.divf %15, %16 : vector<8x96xf32>
    %18 = vector.extract_strided_slice %10 {offsets = [0, 96], sizes = [8, 32], strides = [1, 1]} : vector<8x128xf32> to vector<8x32xf32>
    %19 = math.tanh %18 : vector<8x32xf32>
    %20 = vector.extract_strided_slice %17 {offsets = [0, 0], sizes = [8, 32], strides = [1, 1]} : vector<8x96xf32> to vector<8x32xf32>
    %21 = vector.extract_strided_slice %17 {offsets = [0, 32], sizes = [8, 32], strides = [1, 1]} : vector<8x96xf32> to vector<8x32xf32>
    %22 = vector.extract_strided_slice %17 {offsets = [0, 64], sizes = [8, 32], strides = [1, 1]} : vector<8x96xf32> to vector<8x32xf32>
    %23 = arith.mulf %21, %11 : vector<8x32xf32>
    %24 = arith.mulf %20, %19 : vector<8x32xf32>
    %25 = arith.addf %23, %24 : vector<8x32xf32>
    %26 = math.tanh %25 : vector<8x32xf32>
    %27 = arith.mulf %22, %26 : vector<8x32xf32>
    %cst_10 = arith.constant 0.000000e+00 : f32
    %28 = vector.broadcast %cst_10 : f32 to vector<8x32xf32>
    %cst_11 = arith.constant 0.000000e+00 : f32
    %29 = vector.broadcast %cst_11 : f32 to vector<8x32xf32>
    %30 = tpu.concatenate %27, %28 in 1 : vector<8x32xf32>, vector<8x32xf32> -> vector<8x64xf32>
    %cst_12 = arith.constant dense<0.000000e+00> : vector<8x256xf32>
    %31 = tpu.matmul %30, %1, %cst_12 {dimension_numbers = #tpu.dot_dimension_numbers<[1], [0], [0], [1], [0, 0, 1, 1], [], []>} : vector<8x64xf32>, vector<64x256xf32>, vector<8x256xf32> -> vector<8x256xf32>
    %32 = vector.extract_strided_slice %31 {offsets = [0, 128], sizes = [8, 128], strides = [1, 1]} : vector<8x256xf32> to vector<8x128xf32>
    %33 = vector.broadcast %4 : vector<1x128xf32> to vector<8x128xf32>
    %34 = arith.addf %32, %33 : vector<8x128xf32>
    %35 = vector.extract_strided_slice %34 {offsets = [0, 0], sizes = [8, 96], strides = [1, 1]} : vector<8x128xf32> to vector<8x96xf32>
    %36 = arith.negf %35 : vector<8x96xf32>
    %37 = math.exp %36 : vector<8x96xf32>
    %cst_13 = arith.constant 1.000000e+00 : f32
    %38 = vector.broadcast %cst_13 : f32 to vector<8x96xf32>
    %39 = arith.addf %38, %37 : vector<8x96xf32>
    %40 = arith.divf %38, %39 : vector<8x96xf32>
    %41 = vector.extract_strided_slice %34 {offsets = [0, 96], sizes = [8, 32], strides = [1, 1]} : vector<8x128xf32> to vector<8x32xf32>
    %42 = math.tanh %41 : vector<8x32xf32>
    %43 = vector.extract_strided_slice %40 {offsets = [0, 0], sizes = [8, 32], strides = [1, 1]} : vector<8x96xf32> to vector<8x32xf32>
    %44 = vector.extract_strided_slice %40 {offsets = [0, 32], sizes = [8, 32], strides = [1, 1]} : vector<8x96xf32> to vector<8x32xf32>
    %45 = vector.extract_strided_slice %40 {offsets = [0, 64], sizes = [8, 32], strides = [1, 1]} : vector<8x96xf32> to vector<8x32xf32>
    %46 = arith.mulf %44, %29 : vector<8x32xf32>
    %47 = arith.mulf %43, %42 : vector<8x32xf32>
    %48 = arith.addf %46, %47 : vector<8x32xf32>
    %49 = math.tanh %48 : vector<8x32xf32>
    %50 = arith.mulf %45, %49 : vector<8x32xf32>
    %51 = vector.extract_strided_slice %31 {offsets = [0, 0], sizes = [8, 128], strides = [1, 1]} : vector<8x256xf32> to vector<8x128xf32>
    %52 = vector.extract_strided_slice %9 {offsets = [8, 0], sizes = [8, 128], strides = [1, 1]} : vector<40x128xf32> to vector<8x128xf32>
    %53 = arith.addf %51, %52 : vector<8x128xf32>
    %54 = vector.extract_strided_slice %53 {offsets = [0, 0], sizes = [8, 96], strides = [1, 1]} : vector<8x128xf32> to vector<8x96xf32>
    %55 = arith.negf %54 : vector<8x96xf32>
    %56 = math.exp %55 : vector<8x96xf32>
    %cst_14 = arith.constant 1.000000e+00 : f32
    %57 = vector.broadcast %cst_14 : f32 to vector<8x96xf32>
    %58 = arith.addf %57, %56 : vector<8x96xf32>
    %59 = arith.divf %57, %58 : vector<8x96xf32>
    %60 = vector.extract_strided_slice %53 {offsets = [0, 96], sizes = [8, 32], strides = [1, 1]} : vector<8x128xf32> to vector<8x32xf32>
    %61 = math.tanh %60 : vector<8x32xf32>
    %62 = vector.extract_strided_slice %59 {offsets = [0, 0], sizes = [8, 32], strides = [1, 1]} : vector<8x96xf32> to vector<8x32xf32>
    %63 = vector.extract_strided_slice %59 {offsets = [0, 32], sizes = [8, 32], strides = [1, 1]} : vector<8x96xf32> to vector<8x32xf32>
    %64 = vector.extract_strided_slice %59 {offsets = [0, 64], sizes = [8, 32], strides = [1, 1]} : vector<8x96xf32> to vector<8x32xf32>
    %65 = arith.mulf %63, %25 : vector<8x32xf32>
    %66 = arith.mulf %62, %61 : vector<8x32xf32>
    %67 = arith.addf %65, %66 : vector<8x32xf32>
    %68 = math.tanh %67 : vector<8x32xf32>
    %69 = arith.mulf %64, %68 : vector<8x32xf32>
    %70 = tpu.concatenate %69, %50 in 1 : vector<8x32xf32>, vector<8x32xf32> -> vector<8x64xf32>
    %cst_15 = arith.constant dense<0.000000e+00> : vector<8x256xf32>
    %71 = tpu.matmul %70, %1, %cst_15 {dimension_numbers = #tpu.dot_dimension_numbers<[1], [0], [0], [1], [0, 0, 1, 1], [], []>} : vector<8x64xf32>, vector<64x256xf32>, vector<8x256xf32> -> vector<8x256xf32>
    %72 = vector.extract_strided_slice %71 {offsets = [0, 128], sizes = [8, 128], strides = [1, 1]} : vector<8x256xf32> to vector<8x128xf32>
    %73 = vector.broadcast %4 : vector<1x128xf32> to vector<8x128xf32>
    %74 = arith.addf %72, %73 : vector<8x128xf32>
    %75 = vector.extract_strided_slice %74 {offsets = [0, 0], sizes = [8, 96], strides = [1, 1]} : vector<8x128xf32> to vector<8x96xf32>
    %76 = arith.negf %75 : vector<8x96xf32>
    %77 = math.exp %76 : vector<8x96xf32>
    %cst_16 = arith.constant 1.000000e+00 : f32
    %78 = vector.broadcast %cst_16 : f32 to vector<8x96xf32>
    %79 = arith.addf %78, %77 : vector<8x96xf32>
    %80 = arith.divf %78, %79 : vector<8x96xf32>
    %81 = vector.extract_strided_slice %74 {offsets = [0, 96], sizes = [8, 32], strides = [1, 1]} : vector<8x128xf32> to vector<8x32xf32>
    %82 = math.tanh %81 : vector<8x32xf32>
    %83 = vector.extract_strided_slice %80 {offsets = [0, 0], sizes = [8, 32], strides = [1, 1]} : vector<8x96xf32> to vector<8x32xf32>
    %84 = vector.extract_strided_slice %80 {offsets = [0, 32], sizes = [8, 32], strides = [1, 1]} : vector<8x96xf32> to vector<8x32xf32>
    %85 = vector.extract_strided_slice %80 {offsets = [0, 64], sizes = [8, 32], strides = [1, 1]} : vector<8x96xf32> to vector<8x32xf32>
    %86 = arith.mulf %84, %48 : vector<8x32xf32>
    %87 = arith.mulf %83, %82 : vector<8x32xf32>
    %88 = arith.addf %86, %87 : vector<8x32xf32>
    %89 = math.tanh %88 : vector<8x32xf32>
    %90 = arith.mulf %85, %89 : vector<8x32xf32>
    %91 = vector.extract_strided_slice %71 {offsets = [0, 0], sizes = [8, 128], strides = [1, 1]} : vector<8x256xf32> to vector<8x128xf32>
    %92 = vector.extract_strided_slice %9 {offsets = [16, 0], sizes = [8, 128], strides = [1, 1]} : vector<40x128xf32> to vector<8x128xf32>
    %93 = arith.addf %91, %92 : vector<8x128xf32>
    %94 = vector.extract_strided_slice %93 {offsets = [0, 0], sizes = [8, 96], strides = [1, 1]} : vector<8x128xf32> to vector<8x96xf32>
    %95 = arith.negf %94 : vector<8x96xf32>
    %96 = math.exp %95 : vector<8x96xf32>
    %cst_17 = arith.constant 1.000000e+00 : f32
    %97 = vector.broadcast %cst_17 : f32 to vector<8x96xf32>
    %98 = arith.addf %97, %96 : vector<8x96xf32>
    %99 = arith.divf %97, %98 : vector<8x96xf32>
    %100 = vector.extract_strided_slice %93 {offsets = [0, 96], sizes = [8, 32], strides = [1, 1]} : vector<8x128xf32> to vector<8x32xf32>
    %101 = math.tanh %100 : vector<8x32xf32>
    %102 = vector.extract_strided_slice %99 {offsets = [0, 0], sizes = [8, 32], strides = [1, 1]} : vector<8x96xf32> to vector<8x32xf32>
    %103 = vector.extract_strided_slice %99 {offsets = [0, 32], sizes = [8, 32], strides = [1, 1]} : vector<8x96xf32> to vector<8x32xf32>
    %104 = vector.extract_strided_slice %99 {offsets = [0, 64], sizes = [8, 32], strides = [1, 1]} : vector<8x96xf32> to vector<8x32xf32>
    %105 = arith.mulf %103, %67 : vector<8x32xf32>
    %106 = arith.mulf %102, %101 : vector<8x32xf32>
    %107 = arith.addf %105, %106 : vector<8x32xf32>
    %108 = math.tanh %107 : vector<8x32xf32>
    %109 = arith.mulf %104, %108 : vector<8x32xf32>
    %110 = tpu.concatenate %109, %90 in 1 : vector<8x32xf32>, vector<8x32xf32> -> vector<8x64xf32>
    %cst_18 = arith.constant dense<0.000000e+00> : vector<8x256xf32>
    %111 = tpu.matmul %110, %1, %cst_18 {dimension_numbers = #tpu.dot_dimension_numbers<[1], [0], [0], [1], [0, 0, 1, 1], [], []>} : vector<8x64xf32>, vector<64x256xf32>, vector<8x256xf32> -> vector<8x256xf32>
    %112 = vector.extract_strided_slice %111 {offsets = [0, 128], sizes = [8, 128], strides = [1, 1]} : vector<8x256xf32> to vector<8x128xf32>
    %113 = vector.broadcast %4 : vector<1x128xf32> to vector<8x128xf32>
    %114 = arith.addf %112, %113 : vector<8x128xf32>
    %115 = vector.extract_strided_slice %114 {offsets = [0, 0], sizes = [8, 96], strides = [1, 1]} : vector<8x128xf32> to vector<8x96xf32>
    %116 = arith.negf %115 : vector<8x96xf32>
    %117 = math.exp %116 : vector<8x96xf32>
    %cst_19 = arith.constant 1.000000e+00 : f32
    %118 = vector.broadcast %cst_19 : f32 to vector<8x96xf32>
    %119 = arith.addf %118, %117 : vector<8x96xf32>
    %120 = arith.divf %118, %119 : vector<8x96xf32>
    %121 = vector.extract_strided_slice %114 {offsets = [0, 96], sizes = [8, 32], strides = [1, 1]} : vector<8x128xf32> to vector<8x32xf32>
    %122 = math.tanh %121 : vector<8x32xf32>
    %123 = vector.extract_strided_slice %120 {offsets = [0, 0], sizes = [8, 32], strides = [1, 1]} : vector<8x96xf32> to vector<8x32xf32>
    %124 = vector.extract_strided_slice %120 {offsets = [0, 32], sizes = [8, 32], strides = [1, 1]} : vector<8x96xf32> to vector<8x32xf32>
    %125 = vector.extract_strided_slice %120 {offsets = [0, 64], sizes = [8, 32], strides = [1, 1]} : vector<8x96xf32> to vector<8x32xf32>
    %126 = arith.mulf %124, %88 : vector<8x32xf32>
    %127 = arith.mulf %123, %122 : vector<8x32xf32>
    %128 = arith.addf %126, %127 : vector<8x32xf32>
    %129 = math.tanh %128 : vector<8x32xf32>
    %130 = arith.mulf %125, %129 : vector<8x32xf32>
    %131 = vector.extract_strided_slice %111 {offsets = [0, 0], sizes = [8, 128], strides = [1, 1]} : vector<8x256xf32> to vector<8x128xf32>
    %132 = vector.extract_strided_slice %9 {offsets = [24, 0], sizes = [8, 128], strides = [1, 1]} : vector<40x128xf32> to vector<8x128xf32>
    %133 = arith.addf %131, %132 : vector<8x128xf32>
    %134 = vector.extract_strided_slice %133 {offsets = [0, 0], sizes = [8, 96], strides = [1, 1]} : vector<8x128xf32> to vector<8x96xf32>
    %135 = arith.negf %134 : vector<8x96xf32>
    %136 = math.exp %135 : vector<8x96xf32>
    %cst_20 = arith.constant 1.000000e+00 : f32
    %137 = vector.broadcast %cst_20 : f32 to vector<8x96xf32>
    %138 = arith.addf %137, %136 : vector<8x96xf32>
    %139 = arith.divf %137, %138 : vector<8x96xf32>
    %140 = vector.extract_strided_slice %133 {offsets = [0, 96], sizes = [8, 32], strides = [1, 1]} : vector<8x128xf32> to vector<8x32xf32>
    %141 = math.tanh %140 : vector<8x32xf32>
    %142 = vector.extract_strided_slice %139 {offsets = [0, 0], sizes = [8, 32], strides = [1, 1]} : vector<8x96xf32> to vector<8x32xf32>
    %143 = vector.extract_strided_slice %139 {offsets = [0, 32], sizes = [8, 32], strides = [1, 1]} : vector<8x96xf32> to vector<8x32xf32>
    %144 = vector.extract_strided_slice %139 {offsets = [0, 64], sizes = [8, 32], strides = [1, 1]} : vector<8x96xf32> to vector<8x32xf32>
    %145 = arith.mulf %143, %107 : vector<8x32xf32>
    %146 = arith.mulf %142, %141 : vector<8x32xf32>
    %147 = arith.addf %145, %146 : vector<8x32xf32>
    %148 = math.tanh %147 : vector<8x32xf32>
    %149 = arith.mulf %144, %148 : vector<8x32xf32>
    %150 = tpu.concatenate %149, %130 in 1 : vector<8x32xf32>, vector<8x32xf32> -> vector<8x64xf32>
    %cst_21 = arith.constant dense<0.000000e+00> : vector<8x256xf32>
    %151 = tpu.matmul %150, %1, %cst_21 {dimension_numbers = #tpu.dot_dimension_numbers<[1], [0], [0], [1], [0, 0, 1, 1], [], []>} : vector<8x64xf32>, vector<64x256xf32>, vector<8x256xf32> -> vector<8x256xf32>
    %152 = vector.extract_strided_slice %151 {offsets = [0, 128], sizes = [8, 128], strides = [1, 1]} : vector<8x256xf32> to vector<8x128xf32>
    %153 = vector.broadcast %4 : vector<1x128xf32> to vector<8x128xf32>
    %154 = arith.addf %152, %153 : vector<8x128xf32>
    %155 = vector.extract_strided_slice %154 {offsets = [0, 0], sizes = [8, 96], strides = [1, 1]} : vector<8x128xf32> to vector<8x96xf32>
    %156 = arith.negf %155 : vector<8x96xf32>
    %157 = math.exp %156 : vector<8x96xf32>
    %cst_22 = arith.constant 1.000000e+00 : f32
    %158 = vector.broadcast %cst_22 : f32 to vector<8x96xf32>
    %159 = arith.addf %158, %157 : vector<8x96xf32>
    %160 = arith.divf %158, %159 : vector<8x96xf32>
    %161 = vector.extract_strided_slice %154 {offsets = [0, 96], sizes = [8, 32], strides = [1, 1]} : vector<8x128xf32> to vector<8x32xf32>
    %162 = math.tanh %161 : vector<8x32xf32>
    %163 = vector.extract_strided_slice %160 {offsets = [0, 0], sizes = [8, 32], strides = [1, 1]} : vector<8x96xf32> to vector<8x32xf32>
    %164 = vector.extract_strided_slice %160 {offsets = [0, 32], sizes = [8, 32], strides = [1, 1]} : vector<8x96xf32> to vector<8x32xf32>
    %165 = vector.extract_strided_slice %160 {offsets = [0, 64], sizes = [8, 32], strides = [1, 1]} : vector<8x96xf32> to vector<8x32xf32>
    %166 = arith.mulf %164, %128 : vector<8x32xf32>
    %167 = arith.mulf %163, %162 : vector<8x32xf32>
    %168 = arith.addf %166, %167 : vector<8x32xf32>
    %169 = math.tanh %168 : vector<8x32xf32>
    %170 = arith.mulf %165, %169 : vector<8x32xf32>
    %171 = vector.extract_strided_slice %151 {offsets = [0, 0], sizes = [8, 128], strides = [1, 1]} : vector<8x256xf32> to vector<8x128xf32>
    %172 = vector.extract_strided_slice %9 {offsets = [32, 0], sizes = [8, 128], strides = [1, 1]} : vector<40x128xf32> to vector<8x128xf32>
    %173 = arith.addf %171, %172 : vector<8x128xf32>
    %174 = vector.extract_strided_slice %173 {offsets = [0, 0], sizes = [8, 96], strides = [1, 1]} : vector<8x128xf32> to vector<8x96xf32>
    %175 = arith.negf %174 : vector<8x96xf32>
    %176 = math.exp %175 : vector<8x96xf32>
    %cst_23 = arith.constant 1.000000e+00 : f32
    %177 = vector.broadcast %cst_23 : f32 to vector<8x96xf32>
    %178 = arith.addf %177, %176 : vector<8x96xf32>
    %179 = arith.divf %177, %178 : vector<8x96xf32>
    %180 = vector.extract_strided_slice %173 {offsets = [0, 96], sizes = [8, 32], strides = [1, 1]} : vector<8x128xf32> to vector<8x32xf32>
    %181 = math.tanh %180 : vector<8x32xf32>
    %182 = vector.extract_strided_slice %179 {offsets = [0, 0], sizes = [8, 32], strides = [1, 1]} : vector<8x96xf32> to vector<8x32xf32>
    %183 = vector.extract_strided_slice %179 {offsets = [0, 32], sizes = [8, 32], strides = [1, 1]} : vector<8x96xf32> to vector<8x32xf32>
    %184 = vector.extract_strided_slice %179 {offsets = [0, 64], sizes = [8, 32], strides = [1, 1]} : vector<8x96xf32> to vector<8x32xf32>
    %185 = arith.mulf %183, %147 : vector<8x32xf32>
    %186 = arith.mulf %182, %181 : vector<8x32xf32>
    %187 = arith.addf %185, %186 : vector<8x32xf32>
    %188 = math.tanh %187 : vector<8x32xf32>
    %189 = arith.mulf %184, %188 : vector<8x32xf32>
    %190 = tpu.concatenate %189, %170 in 1 : vector<8x32xf32>, vector<8x32xf32> -> vector<8x64xf32>
    %cst_24 = arith.constant dense<0.000000e+00> : vector<8x256xf32>
    %191 = tpu.matmul %190, %1, %cst_24 {dimension_numbers = #tpu.dot_dimension_numbers<[1], [0], [0], [1], [0, 0, 1, 1], [], []>} : vector<8x64xf32>, vector<64x256xf32>, vector<8x256xf32> -> vector<8x256xf32>
    %192 = vector.extract_strided_slice %191 {offsets = [0, 128], sizes = [8, 128], strides = [1, 1]} : vector<8x256xf32> to vector<8x128xf32>
    %193 = vector.broadcast %4 : vector<1x128xf32> to vector<8x128xf32>
    %194 = arith.addf %192, %193 : vector<8x128xf32>
    %195 = vector.extract_strided_slice %194 {offsets = [0, 0], sizes = [8, 96], strides = [1, 1]} : vector<8x128xf32> to vector<8x96xf32>
    %196 = arith.negf %195 : vector<8x96xf32>
    %197 = math.exp %196 : vector<8x96xf32>
    %cst_25 = arith.constant 1.000000e+00 : f32
    %198 = vector.broadcast %cst_25 : f32 to vector<8x96xf32>
    %199 = arith.addf %198, %197 : vector<8x96xf32>
    %200 = arith.divf %198, %199 : vector<8x96xf32>
    %201 = vector.extract_strided_slice %194 {offsets = [0, 96], sizes = [8, 32], strides = [1, 1]} : vector<8x128xf32> to vector<8x32xf32>
    %202 = math.tanh %201 : vector<8x32xf32>
    %203 = vector.extract_strided_slice %200 {offsets = [0, 0], sizes = [8, 32], strides = [1, 1]} : vector<8x96xf32> to vector<8x32xf32>
    %204 = vector.extract_strided_slice %200 {offsets = [0, 32], sizes = [8, 32], strides = [1, 1]} : vector<8x96xf32> to vector<8x32xf32>
    %205 = vector.extract_strided_slice %200 {offsets = [0, 64], sizes = [8, 32], strides = [1, 1]} : vector<8x96xf32> to vector<8x32xf32>
    %206 = arith.mulf %204, %168 : vector<8x32xf32>
    %207 = arith.mulf %203, %202 : vector<8x32xf32>
    %208 = arith.addf %206, %207 : vector<8x32xf32>
    %209 = math.tanh %208 : vector<8x32xf32>
    %210 = arith.mulf %205, %209 : vector<8x32xf32>
    %cst_26 = arith.constant dense<0.000000e+00> : vector<8x8xf32>
    %211 = tpu.matmul %210, %2, %cst_26 {dimension_numbers = #tpu.dot_dimension_numbers<[1], [0], [0], [1], [0, 0, 1, 1], [], []>} : vector<8x32xf32>, vector<32x8xf32>, vector<8x8xf32> -> vector<8x8xf32>
    %212 = vector.broadcast %5 : vector<1x8xf32> to vector<8x8xf32>
    %213 = arith.addf %211, %212 : vector<8x8xf32>
    %c0_27 = arith.constant 0 : index
    %c0_28 = arith.constant 0 : index
    %214 = vector.load %arg2[%c0_27, %c0_28] : memref<8x8xf32, #tpu.memory_space<vmem>>, vector<8x8xf32>
    tpu.vector_store %arg2[%c0_27, %c0_28], %213 {strides = array<i32>} : memref<8x8xf32, #tpu.memory_space<vmem>>, vector<8x8xf32>,
    return
  }
}

</mosaic_0001>

<llo_original>
// kernel: tpu_custom_call.1
$region0: #{tpu_custom_call.1}
  #allocation0 [shape = 'u32[]', space=smem, size = 0x4, offset = 0x4, fixed_abs, tag = 'smem constant byte address 0x4 - core index']
  #allocation1 [shape = 'u32[144,128]{1,0:T(1,128)}', space=vmem, size = 0x12000, scoped, tag = 'internal scratch']
  %s0 = inlined_call_operand.vmem [shape: f32[40,16], index: 0, kind: input, shape index: {}]
  %s1 = inlined_call_operand.hbm [shape: f32[120,256], index: 1, kind: input, shape index: {}]
  %s2 = inlined_call_operand.hbm [shape: f32[8,8], index: 2, kind: output, shape index: {}]
  %s3 = sld [smem:[#allocation0]]
  $region22: #{tpu_custom_call.1} parent=0
    _
  %s5 = ssub.s32 1, %s3
  %s6 = scalar_select 0, %s5, %s3
  $region1: #{tpu_custom_call.1} parent=0
    #allocation2 [shape = 'u8[122880]{0}', space=vmem, size = 0x1e000, scoped, tag = 'input window, operand 1, single buffered']
    #allocation3 [shape = 's32[1]{0}', space=sflag, size = 0x4, scoped, tag = 'scoped memory for tpu_custom_call.1']
    #allocation4 [shape = 's32[1]{0}', space=sflag, size = 0x4, scoped, tag = 'scoped memory for tpu_custom_call.1']
    #allocation5 [shape = 'u8[4096]{0}', space=vmem, size = 0x1000, scoped, tag = 'output window, operand 0, single buffered']
    %7 = vsyncpa [#allocation3], 0
    %8 = vsyncpa [#allocation4], 0
    // Predicated region
    $region2: #{tpu_custom_call.1} parent=1 // pred_check
      _
    $region3: #{tpu_custom_call.1} parent=1 // pred_check_branch
      %10 = sbr.rel (0) target = $region5
    $region4: #{tpu_custom_call.1} parent=1 // pred_region
      _
    $region5: #{tpu_custom_call.1} parent=1 // pred_fallthru
      _
    // Predicated region
    $region6: #{tpu_custom_call.1} parent=1 // pred_check
      _
    $region7: #{tpu_custom_call.1} parent=1 // pred_check_branch
      %12 = sbr.rel (0) target = $region9
    $region8: #{tpu_custom_call.1} parent=1 // pred_region
      %s14 = ssub.s32 3840, 3840
      %15 = vsyncadd [#allocation3], %s14
      %s16 = sshll.u32 [#allocation2], 4
      %s17 = int_to_ptr.vmem [resolvable:$true] %s16
      %22 = dma.hbm_to_vmem [thread:$0]  %s1, 3840, %s17, [#allocation3], 256, 256, 16
    $region9: #{tpu_custom_call.1} parent=1 // pred_fallthru
      _
    // Predicated region
    $region10: #{tpu_custom_call.1} parent=1 // pred_check
      _
    $region11: #{tpu_custom_call.1} parent=1 // pred_check_branch
      %24 = sbr.rel (0) target = $region13
    $region12: #{tpu_custom_call.1} parent=1 // pred_region
      %25 = dma.done [#allocation3], 3840
    $region13: #{tpu_custom_call.1} parent=1 // pred_fallthru
      _
    %v26 = vld [vmem:[#allocation2] sm:$0xff]
    %v27 = vld [vmem:[#allocation2 + $0x10] sm:$0xff]
    %v28 = vld [vmem:[#allocation2 + $0x20] sm:$0xff]
    %v29 = vld [vmem:[#allocation2 + $0x28] sm:$0xff]
    %v30 = vld [vmem:[#allocation2 + $0x30] sm:$0xff]
    %v31 = vld [vmem:[#allocation2 + $0x38] sm:$0xff]
    %v32 = vld [vmem:[#allocation2 + $0x40] sm:$0xff]
    %v33 = vld [vmem:[#allocation2 + $0x48] sm:$0xff]
    %v34 = vld [vmem:[#allocation2 + $0x50] sm:$0xff]
    %v35 = vld [vmem:[#allocation2 + $0x58] sm:$0xff]
    %v36 = vld [vmem:[#allocation2 + $0x60] sm:$0xff]
    %v37 = vld [vmem:[#allocation2 + $0x68] sm:$0xff]
    %v38 = vld [vmem:[#allocation2 + $0x70] sm:$0xff]
    %v39 = vld [vmem:[#allocation2 + $0x78] sm:$0xff]
    %v40 = vld [vmem:[#allocation2 + $0x80] sm:$0xff]
    %v41 = vld [vmem:[#allocation2 + $0x88] sm:$0xff]
    %v42 = vld [vmem:[#allocation2 + $0x90] sm:$0xff]
    %v43 = vld [vmem:[#allocation2 + $0x98] sm:$0xff]
    %v44 = vld [vmem:[#allocation2 + $0xa0] sm:$0xff]
    %v45 = vld [vmem:[#allocation2 + $0xb0] sm:$0xff]
    %v46 = vld [vmem:[#allocation2 + $0xc0] sm:$0xff]
    %v47 = vld [vmem:[#allocation2 + $0xd0] sm:$0xff]
    %v48 = vld [vmem:[#allocation2 + $0xe0] ss:$0 sm:$0xff]
    %v49 = vld [vmem:[#allocation2 + $0xe8] ss:$0 sm:$0xff]
    %v50 = vld [vmem:[#allocation2 + $0xe1] ss:$0 sm:$0xff]
    %v51 = vld [vmem:[%s0] sm:$0xff]
    %v52 = vld [vmem:[%s0 + $0x8] sm:$0xff]
    %v53 = vld [vmem:[%s0 + $0x10] sm:$0xff]
    %v54 = vld [vmem:[%s0 + $0x18] sm:$0xff]
    %v55 = vld [vmem:[%s0 + $0x20] sm:$0xff]
    %vm56 = vcmask 130048
    %v58 = vsel %vm56, %v51, 0
    %v61 = vsel %vm56, %v52, 0
    %v64 = vsel %vm56, %v53, 0
    %v67 = vsel %vm56, %v54, 0
    %v70 = vsel %vm56, %v55, 0
    %72 = vmatprep.subr.mxu0 0.0
    %73 = vmatpush1.msra.mxu0 %v26
    %74 = vmatprep.subr.mxu0 0.0
    %75 = vmatpush1.msra.mxu0 %v27
    %76 = vmatprep.subr.mxu0 0.0
    %77 = vmatpush1.msra.mxu0 0.0
    %78 = vmatprep.subr.mxu0 0.0
    %79 = vmatpush1.msra.mxu0 0.0
    %80 = vmatprep.subr.mxu0 0.0
    %81 = vmatpush1.msra.mxu0 0.0
    %82 = vmatprep.subr.mxu0 0.0
    %83 = vmatpush1.msra.mxu0 0.0
    %84 = vmatprep.subr.mxu0 0.0
    %85 = vmatpush1.msra.mxu0 0.0
    %86 = vmatprep.subr.mxu0 0.0
    %87 = vmatpush1.msra.mxu0 0.0
    %88 = vmatprep.subr.mxu0 0.0
    %89 = vmatpush1.msra.mxu0 0.0
    %90 = vmatprep.subr.mxu0 0.0
    %91 = vmatpush1.msra.mxu0 0.0
    %92 = vmatprep.subr.mxu0 0.0
    %93 = vmatpush1.msra.mxu0 0.0
    %94 = vmatprep.subr.mxu0 0.0
    %95 = vmatpush1.msra.mxu0 0.0
    %96 = vmatprep.subr.mxu0 0.0
    %97 = vmatpush1.msra.mxu0 0.0
    %98 = vmatprep.subr.mxu0 0.0
    %99 = vmatpush1.msra.mxu0 0.0
    %100 = vmatprep.subr.mxu0 0.0
    %101 = vmatpush1.msra.mxu0 0.0
    %102 = vmatprep.subr.mxu0 0.0
    %103 = vmatpush1.msra.mxu0 0.0
    %104 = vmatprep.subr.mxu0 0.0
    %105 = vmatpush1.msra.mxu0 0.0
    %106 = vmatprep.subr.mxu0 0.0
    %107 = vmatpush1.msra.mxu0 0.0
    %108 = vmatprep.subr.mxu0 0.0
    %109 = vmatpush1.msra.mxu0 0.0
    %110 = vmatprep.subr.mxu0 0.0
    %111 = vmatpush1.msra.mxu0 0.0
    %112 = vmatprep.subr.mxu0 0.0
    %113 = vmatpush1.msra.mxu0 0.0
    %114 = vmatprep.subr.mxu0 0.0
    %115 = vmatpush1.msra.mxu0 0.0
    %116 = vmatprep.subr.mxu0 0.0
    %117 = vmatpush1.msra.mxu0 0.0
    %118 = vmatprep.subr.mxu0 0.0
    %119 = vmatpush1.msra.mxu0 0.0
    %120 = vmatprep.subr.mxu0 0.0
    %121 = vmatpush1.msra.mxu0 0.0
    %122 = vmatprep.subr.mxu0 0.0
    %123 = vmatpush1.msra.mxu0 0.0
    %124 = vmatprep.subr.mxu0 0.0
    %125 = vmatpush1.msra.mxu0 0.0
    %126 = vmatprep.subr.mxu0 0.0
    %127 = vmatpush1.msra.mxu0 0.0
    %128 = vmatprep.subr.mxu0 0.0
    %129 = vmatpush1.msra.mxu0 0.0
    %130 = vmatprep.subr.mxu0 0.0
    %131 = vmatpush1.msra.mxu0 0.0
    %132 = vmatprep.subr.mxu0 0.0
    %133 = vmatpush1.msra.mxu0 0.0
    %134 = vmatprep.subr.mxu0 0.0
    %135 = vmatpush1.msra.mxu0 0.0
    %136 = vmatprep.mubr.f32.mxu0 0.0
    %137 = vmatmul.mubr.f32.gmra.mrb[0].mxu0 %v58
    %v138 = vpop.f32.mrb[0].mxu0
    %v139 = vadd.f32 %v48, %v138
    %v140 = vpop.f32.mrb[0].mxu0
    %141 = vmatprep.mubr.f32.mxu0 0.0
    %142 = vmatmul.mubr.f32.gmra.mrb[0].mxu0 %v61
    %v143 = vpop.f32.mrb[0].mxu0
    %v144 = vadd.f32 %v48, %v143
    %v145 = vpop.f32.mrb[0].mxu0
    %146 = vmatprep.mubr.f32.mxu0 0.0
    %147 = vmatmul.mubr.f32.gmra.mrb[0].mxu0 %v64
    %v148 = vpop.f32.mrb[0].mxu0
    %v149 = vadd.f32 %v48, %v148
    %v150 = vpop.f32.mrb[0].mxu0
    %151 = vmatprep.mubr.f32.mxu0 0.0
    %152 = vmatmul.mubr.f32.gmra.mrb[0].mxu0 %v67
    %v153 = vpop.f32.mrb[0].mxu0
    %v154 = vadd.f32 %v48, %v153
    %v155 = vpop.f32.mrb[0].mxu0
    %156 = vmatprep.mubr.f32.mxu0 0.0
    %157 = vmatmul.mubr.f32.gmra.mrb[0].mxu0 %v70
    %v158 = vpop.f32.mrb[0].mxu0
    %v159 = vadd.f32 %v48, %v158
    %v160 = vpop.f32.mrb[0].mxu0
    %161 = vdwg.mxu0
    %v162 = vxor.u32 %v139, 2147483648
    %v163 = vmul.f32 %v162, 1.442695
    %v164 = vpow.pop %v163
    %v165 = vadd.f32 %v164, 1.0
    %v166 = vrcp.pop %v165
    %v167 = vmul.f32 1.0, %v166
    %v168 = vtanh.pop %v139
    %v169 = vmul.f32 %v167, 0.0
    %171 = vrot.lane.b32.xlu0 %v168, 32
    %v172 = vpop.permute.xlu0 %171
    %v174 = vmul.f32 %v167, %v172
    %176 = vrot.lane.b32.xlu0 %v174, 32
    %v177 = vpop.permute.xlu0 %176
    %v179 = vadd.f32 %v169, %v177
    %v180 = vtanh.pop %v179
    %182 = vrot.lane.b32.xlu0 %v180, 32
    %v183 = vpop.permute.xlu0 %182
    %v185 = vmul.f32 %v167, %v183
    %187 = vrot.lane.b32.xlu0 %v185, 64
    %v188 = vpop.permute.xlu0 %187
    %vm190 = vcmask 261120
    %v191 = vsel %vm190, %v188, 0.0
    %vm192 = vcmask 523264
    %v194 = vsel %vm192, %v191, 0
    %196 = vmatprep.subr.mxu0 %v29
    %197 = vmatpush1.msra.mxu0 %v28
    %198 = vmatprep.subr.mxu0 %v31
    %199 = vmatpush1.msra.mxu0 %v30
    %200 = vmatprep.subr.mxu0 %v33
    %201 = vmatpush1.msra.mxu0 %v32
    %202 = vmatprep.subr.mxu0 %v35
    %203 = vmatpush1.msra.mxu0 %v34
    %204 = vmatprep.subr.mxu0 %v37
    %205 = vmatpush1.msra.mxu0 %v36
    %206 = vmatprep.subr.mxu0 %v39
    %207 = vmatpush1.msra.mxu0 %v38
    %208 = vmatprep.subr.mxu0 %v41
    %209 = vmatpush1.msra.mxu0 %v40
    %210 = vmatprep.subr.mxu0 %v43
    %211 = vmatpush1.msra.mxu0 %v42
    %212 = vmatprep.subr.mxu0 0.0
    %213 = vmatpush1.msra.mxu0 0.0
    %214 = vmatprep.subr.mxu0 0.0
    %215 = vmatpush1.msra.mxu0 0.0
    %216 = vmatprep.subr.mxu0 0.0
    %217 = vmatpush1.msra.mxu0 0.0
    %218 = vmatprep.subr.mxu0 0.0
    %219 = vmatpush1.msra.mxu0 0.0
    %220 = vmatprep.subr.mxu0 0.0
    %221 = vmatpush1.msra.mxu0 0.0
    %222 = vmatprep.subr.mxu0 0.0
    %223 = vmatpush1.msra.mxu0 0.0
    %224 = vmatprep.subr.mxu0 0.0
    %225 = vmatpush1.msra.mxu0 0.0
    %226 = vmatprep.subr.mxu0 0.0
    %227 = vmatpush1.msra.mxu0 0.0
    %228 = vmatprep.subr.mxu0 0.0
    %229 = vmatpush1.msra.mxu0 0.0
    %230 = vmatprep.subr.mxu0 0.0
    %231 = vmatpush1.msra.mxu0 0.0
    %232 = vmatprep.subr.mxu0 0.0
    %233 = vmatpush1.msra.mxu0 0.0
    %234 = vmatprep.subr.mxu0 0.0
    %235 = vmatpush1.msra.mxu0 0.0
    %236 = vmatprep.subr.mxu0 0.0
    %237 = vmatpush1.msra.mxu0 0.0
    %238 = vmatprep.subr.mxu0 0.0
    %239 = vmatpush1.msra.mxu0 0.0
    %240 = vmatprep.subr.mxu0 0.0
    %241 = vmatpush1.msra.mxu0 0.0
    %242 = vmatprep.subr.mxu0 0.0
    %243 = vmatpush1.msra.mxu0 0.0
    %244 = vmatprep.subr.mxu0 0.0
    %245 = vmatpush1.msra.mxu0 0.0
    %246 = vmatprep.subr.mxu0 0.0
    %247 = vmatpush1.msra.mxu0 0.0
    %248 = vmatprep.subr.mxu0 0.0
    %249 = vmatpush1.msra.mxu0 0.0
    %250 = vmatprep.subr.mxu0 0.0
    %251 = vmatpush1.msra.mxu0 0.0
    %252 = vmatprep.subr.mxu0 0.0
    %253 = vmatpush1.msra.mxu0 0.0
    %254 = vmatprep.subr.mxu0 0.0
    %255 = vmatpush1.msra.mxu0 0.0
    %256 = vmatprep.subr.mxu0 0.0
    %257 = vmatpush1.msra.mxu0 0.0
    %258 = vmatprep.subr.mxu0 0.0
    %259 = vmatpush1.msra.mxu0 0.0
    %260 = vmatprep.mubr.f32.mxu0 0.0
    %261 = vmatmul.mubr.f32.gmra.mrb[0].mxu0 %v194
    %v262 = vpop.f32.mrb[0].mxu0
    %v263 = vadd.f32 0.0, %v262
    %v264 = vpop.f32.mrb[0].mxu0
    %v265 = vadd.f32 0.0, %v264
    %266 = vdwg.mxu0
    %v267 = vadd.f32 %v265, %v49
    %v268 = vxor.u32 %v267, 2147483648
    %v269 = vmul.f32 %v268, 1.442695
    %v270 = vpow.pop %v269
    %v271 = vadd.f32 %v270, 1.0
    %v272 = vrcp.pop %v271
    %v273 = vmul.f32 1.0, %v272
    %v274 = vtanh.pop %v267
    %v275 = vmul.f32 %v273, 0.0
    %277 = vrot.lane.b32.xlu0 %v274, 32
    %v278 = vpop.permute.xlu0 %277
    %v280 = vmul.f32 %v273, %v278
    %282 = vrot.lane.b32.xlu0 %v280, 32
    %v283 = vpop.permute.xlu0 %282
    %v285 = vadd.f32 %v275, %v283
    %v286 = vtanh.pop %v285
    %288 = vrot.lane.b32.xlu0 %v286, 32
    %v289 = vpop.permute.xlu0 %288
    %v291 = vmul.f32 %v273, %v289
    %v292 = vadd.f32 %v263, %v144
    %v293 = vxor.u32 %v292, 2147483648
    %v294 = vmul.f32 %v293, 1.442695
    %v295 = vpow.pop %v294
    %v296 = vadd.f32 %v295, 1.0
    %v297 = vrcp.pop %v296
    %v298 = vmul.f32 1.0, %v297
    %v299 = vtanh.pop %v292
    %v300 = vmul.f32 %v298, %v179
    %302 = vrot.lane.b32.xlu0 %v299, 32
    %v303 = vpop.permute.xlu0 %302
    %v305 = vmul.f32 %v298, %v303
    %307 = vrot.lane.b32.xlu0 %v305, 32
    %v308 = vpop.permute.xlu0 %307
    %v310 = vadd.f32 %v300, %v308
    %v311 = vtanh.pop %v310
    %313 = vrot.lane.b32.xlu0 %v311, 32
    %v314 = vpop.permute.xlu0 %313
    %v316 = vmul.f32 %v298, %v314
    %318 = vrot.lane.b32.xlu0 %v316, 64
    %v319 = vpop.permute.xlu0 %318
    %322 = vrot.lane.b32.xlu0 %v291, 96
    %v323 = vpop.permute.xlu0 %322
    %v325 = vsel %vm190, %v319, %v323
    %v327 = vsel %vm192, %v325, 0
    %329 = vmatprep.subr.mxu0 %v29
    %330 = vmatpush1.msra.mxu0 %v28
    %331 = vmatprep.subr.mxu0 %v31
    %332 = vmatpush1.msra.mxu0 %v30
    %333 = vmatprep.subr.mxu0 %v33
    %334 = vmatpush1.msra.mxu0 %v32
    %335 = vmatprep.subr.mxu0 %v35
    %336 = vmatpush1.msra.mxu0 %v34
    %337 = vmatprep.subr.mxu0 %v37
    %338 = vmatpush1.msra.mxu0 %v36
    %339 = vmatprep.subr.mxu0 %v39
    %340 = vmatpush1.msra.mxu0 %v38
    %341 = vmatprep.subr.mxu0 %v41
    %342 = vmatpush1.msra.mxu0 %v40
    %343 = vmatprep.subr.mxu0 %v43
    %344 = vmatpush1.msra.mxu0 %v42
    %345 = vmatprep.subr.mxu0 0.0
    %346 = vmatpush1.msra.mxu0 0.0
    %347 = vmatprep.subr.mxu0 0.0
    %348 = vmatpush1.msra.mxu0 0.0
    %349 = vmatprep.subr.mxu0 0.0
    %350 = vmatpush1.msra.mxu0 0.0
    %351 = vmatprep.subr.mxu0 0.0
    %352 = vmatpush1.msra.mxu0 0.0
    %353 = vmatprep.subr.mxu0 0.0
    %354 = vmatpush1.msra.mxu0 0.0
    %355 = vmatprep.subr.mxu0 0.0
    %356 = vmatpush1.msra.mxu0 0.0
    %357 = vmatprep.subr.mxu0 0.0
    %358 = vmatpush1.msra.mxu0 0.0
    %359 = vmatprep.subr.mxu0 0.0
    %360 = vmatpush1.msra.mxu0 0.0
    %361 = vmatprep.subr.mxu0 0.0
    %362 = vmatpush1.msra.mxu0 0.0
    %363 = vmatprep.subr.mxu0 0.0
    %364 = vmatpush1.msra.mxu0 0.0
    %365 = vmatprep.subr.mxu0 0.0
    %366 = vmatpush1.msra.mxu0 0.0
    %367 = vmatprep.subr.mxu0 0.0
    %368 = vmatpush1.msra.mxu0 0.0
    %369 = vmatprep.subr.mxu0 0.0
    %370 = vmatpush1.msra.mxu0 0.0
    %371 = vmatprep.subr.mxu0 0.0
    %372 = vmatpush1.msra.mxu0 0.0
    %373 = vmatprep.subr.mxu0 0.0
    %374 = vmatpush1.msra.mxu0 0.0
    %375 = vmatprep.subr.mxu0 0.0
    %376 = vmatpush1.msra.mxu0 0.0
    %377 = vmatprep.subr.mxu0 0.0
    %378 = vmatpush1.msra.mxu0 0.0
    %379 = vmatprep.subr.mxu0 0.0
    %380 = vmatpush1.msra.mxu0 0.0
    %381 = vmatprep.subr.mxu0 0.0
    %382 = vmatpush1.msra.mxu0 0.0
    %383 = vmatprep.subr.mxu0 0.0
    %384 = vmatpush1.msra.mxu0 0.0
    %385 = vmatprep.subr.mxu0 0.0
    %386 = vmatpush1.msra.mxu0 0.0
    %387 = vmatprep.subr.mxu0 0.0
    %388 = vmatpush1.msra.mxu0 0.0
    %389 = vmatprep.subr.mxu0 0.0
    %390 = vmatpush1.msra.mxu0 0.0
    %391 = vmatprep.subr.mxu0 0.0
    %392 = vmatpush1.msra.mxu0 0.0
    %393 = vmatprep.mubr.f32.mxu0 0.0
    %394 = vmatmul.mubr.f32.gmra.mrb[0].mxu0 %v327
    %v395 = vpop.f32.mrb[0].mxu0
    %v396 = vadd.f32 0.0, %v395
    %v397 = vpop.f32.mrb[0].mxu0
    %v398 = vadd.f32 0.0, %v397
    %399 = vdwg.mxu0
    %v400 = vadd.f32 %v398, %v49
    %v401 = vxor.u32 %v400, 2147483648
    %v402 = vmul.f32 %v401, 1.442695
    %v403 = vpow.pop %v402
    %v404 = vadd.f32 %v403, 1.0
    %v405 = vrcp.pop %v404
    %v406 = vmul.f32 1.0, %v405
    %v407 = vtanh.pop %v400
    %v408 = vmul.f32 %v406, %v285
    %410 = vrot.lane.b32.xlu0 %v407, 32
    %v411 = vpop.permute.xlu0 %410
    %v413 = vmul.f32 %v406, %v411
    %415 = vrot.lane.b32.xlu0 %v413, 32
    %v416 = vpop.permute.xlu0 %415
    %v418 = vadd.f32 %v408, %v416
    %v419 = vtanh.pop %v418
    %421 = vrot.lane.b32.xlu0 %v419, 32
    %v422 = vpop.permute.xlu0 %421
    %v424 = vmul.f32 %v406, %v422
    %v425 = vadd.f32 %v396, %v149
    %v426 = vxor.u32 %v425, 2147483648
    %v427 = vmul.f32 %v426, 1.442695
    %v428 = vpow.pop %v427
    %v429 = vadd.f32 %v428, 1.0
    %v430 = vrcp.pop %v429
    %v431 = vmul.f32 1.0, %v430
    %v432 = vtanh.pop %v425
    %v433 = vmul.f32 %v431, %v310
    %435 = vrot.lane.b32.xlu0 %v432, 32
    %v436 = vpop.permute.xlu0 %435
    %v438 = vmul.f32 %v431, %v436
    %440 = vrot.lane.b32.xlu0 %v438, 32
    %v441 = vpop.permute.xlu0 %440
    %v443 = vadd.f32 %v433, %v441
    %v444 = vtanh.pop %v443
    %446 = vrot.lane.b32.xlu0 %v444, 32
    %v447 = vpop.permute.xlu0 %446
    %v449 = vmul.f32 %v431, %v447
    %451 = vrot.lane.b32.xlu0 %v449, 64
    %v452 = vpop.permute.xlu0 %451
    %455 = vrot.lane.b32.xlu0 %v424, 96
    %v456 = vpop.permute.xlu0 %455
    %v458 = vsel %vm190, %v452, %v456
    %v460 = vsel %vm192, %v458, 0
    %462 = vmatprep.subr.mxu0 %v29
    %463 = vmatpush1.msra.mxu0 %v28
    %464 = vmatprep.subr.mxu0 %v31
    %465 = vmatpush1.msra.mxu0 %v30
    %466 = vmatprep.subr.mxu0 %v33
    %467 = vmatpush1.msra.mxu0 %v32
    %468 = vmatprep.subr.mxu0 %v35
    %469 = vmatpush1.msra.mxu0 %v34
    %470 = vmatprep.subr.mxu0 %v37
    %471 = vmatpush1.msra.mxu0 %v36
    %472 = vmatprep.subr.mxu0 %v39
    %473 = vmatpush1.msra.mxu0 %v38
    %474 = vmatprep.subr.mxu0 %v41
    %475 = vmatpush1.msra.mxu0 %v40
    %476 = vmatprep.subr.mxu0 %v43
    %477 = vmatpush1.msra.mxu0 %v42
    %478 = vmatprep.subr.mxu0 0.0
    %479 = vmatpush1.msra.mxu0 0.0
    %480 = vmatprep.subr.mxu0 0.0
    %481 = vmatpush1.msra.mxu0 0.0
    %482 = vmatprep.subr.mxu0 0.0
    %483 = vmatpush1.msra.mxu0 0.0
    %484 = vmatprep.subr.mxu0 0.0
    %485 = vmatpush1.msra.mxu0 0.0
    %486 = vmatprep.subr.mxu0 0.0
    %487 = vmatpush1.msra.mxu0 0.0
    %488 = vmatprep.subr.mxu0 0.0
    %489 = vmatpush1.msra.mxu0 0.0
    %490 = vmatprep.subr.mxu0 0.0
    %491 = vmatpush1.msra.mxu0 0.0
    %492 = vmatprep.subr.mxu0 0.0
    %493 = vmatpush1.msra.mxu0 0.0
    %494 = vmatprep.subr.mxu0 0.0
    %495 = vmatpush1.msra.mxu0 0.0
    %496 = vmatprep.subr.mxu0 0.0
    %497 = vmatpush1.msra.mxu0 0.0
    %498 = vmatprep.subr.mxu0 0.0
    %499 = vmatpush1.msra.mxu0 0.0
    %500 = vmatprep.subr.mxu0 0.0
    %501 = vmatpush1.msra.mxu0 0.0
    %502 = vmatprep.subr.mxu0 0.0
    %503 = vmatpush1.msra.mxu0 0.0
    %504 = vmatprep.subr.mxu0 0.0
    %505 = vmatpush1.msra.mxu0 0.0
    %506 = vmatprep.subr.mxu0 0.0
    %507 = vmatpush1.msra.mxu0 0.0
    %508 = vmatprep.subr.mxu0 0.0
    %509 = vmatpush1.msra.mxu0 0.0
    %510 = vmatprep.subr.mxu0 0.0
    %511 = vmatpush1.msra.mxu0 0.0
    %512 = vmatprep.subr.mxu0 0.0
    %513 = vmatpush1.msra.mxu0 0.0
    %514 = vmatprep.subr.mxu0 0.0
    %515 = vmatpush1.msra.mxu0 0.0
    %516 = vmatprep.subr.mxu0 0.0
    %517 = vmatpush1.msra.mxu0 0.0
    %518 = vmatprep.subr.mxu0 0.0
    %519 = vmatpush1.msra.mxu0 0.0
    %520 = vmatprep.subr.mxu0 0.0
    %521 = vmatpush1.msra.mxu0 0.0
    %522 = vmatprep.subr.mxu0 0.0
    %523 = vmatpush1.msra.mxu0 0.0
    %524 = vmatprep.subr.mxu0 0.0
    %525 = vmatpush1.msra.mxu0 0.0
    %526 = vmatprep.mubr.f32.mxu0 0.0
    %527 = vmatmul.mubr.f32.gmra.mrb[0].mxu0 %v460
    %v528 = vpop.f32.mrb[0].mxu0
    %v529 = vadd.f32 0.0, %v528
    %v530 = vpop.f32.mrb[0].mxu0
    %v531 = vadd.f32 0.0, %v530
    %532 = vdwg.mxu0
    %v533 = vadd.f32 %v531, %v49
    %v534 = vxor.u32 %v533, 2147483648
    %v535 = vmul.f32 %v534, 1.442695
    %v536 = vpow.pop %v535
    %v537 = vadd.f32 %v536, 1.0
    %v538 = vrcp.pop %v537
    %v539 = vmul.f32 1.0, %v538
    %v540 = vtanh.pop %v533
    %v541 = vmul.f32 %v539, %v418
    %543 = vrot.lane.b32.xlu0 %v540, 32
    %v544 = vpop.permute.xlu0 %543
    %v546 = vmul.f32 %v539, %v544
    %548 = vrot.lane.b32.xlu0 %v546, 32
    %v549 = vpop.permute.xlu0 %548
    %v551 = vadd.f32 %v541, %v549
    %v552 = vtanh.pop %v551
    %554 = vrot.lane.b32.xlu0 %v552, 32
    %v555 = vpop.permute.xlu0 %554
    %v557 = vmul.f32 %v539, %v555
    %v558 = vadd.f32 %v529, %v154
    %v559 = vxor.u32 %v558, 2147483648
    %v560 = vmul.f32 %v559, 1.442695
    %v561 = vpow.pop %v560
    %v562 = vadd.f32 %v561, 1.0
    %v563 = vrcp.pop %v562
    %v564 = vmul.f32 1.0, %v563
    %v565 = vtanh.pop %v558
    %v566 = vmul.f32 %v564, %v443
    %568 = vrot.lane.b32.xlu0 %v565, 32
    %v569 = vpop.permute.xlu0 %568
    %v571 = vmul.f32 %v564, %v569
    %573 = vrot.lane.b32.xlu0 %v571, 32
    %v574 = vpop.permute.xlu0 %573
    %v576 = vadd.f32 %v566, %v574
    %v577 = vtanh.pop %v576
    %579 = vrot.lane.b32.xlu0 %v577, 32
    %v580 = vpop.permute.xlu0 %579
    %v582 = vmul.f32 %v564, %v580
    %584 = vrot.lane.b32.xlu0 %v582, 64
    %v585 = vpop.permute.xlu0 %584
    %588 = vrot.lane.b32.xlu0 %v557, 96
    %v589 = vpop.permute.xlu0 %588
    %v591 = vsel %vm190, %v585, %v589
    %v593 = vsel %vm192, %v591, 0
    %595 = vmatprep.subr.mxu0 %v29
    %596 = vmatpush1.msra.mxu0 %v28
    %597 = vmatprep.subr.mxu0 %v31
    %598 = vmatpush1.msra.mxu0 %v30
    %599 = vmatprep.subr.mxu0 %v33
    %600 = vmatpush1.msra.mxu0 %v32
    %601 = vmatprep.subr.mxu0 %v35
    %602 = vmatpush1.msra.mxu0 %v34
    %603 = vmatprep.subr.mxu0 %v37
    %604 = vmatpush1.msra.mxu0 %v36
    %605 = vmatprep.subr.mxu0 %v39
    %606 = vmatpush1.msra.mxu0 %v38
    %607 = vmatprep.subr.mxu0 %v41
    %608 = vmatpush1.msra.mxu0 %v40
    %609 = vmatprep.subr.mxu0 %v43
    %610 = vmatpush1.msra.mxu0 %v42
    %611 = vmatprep.subr.mxu0 0.0
    %612 = vmatpush1.msra.mxu0 0.0
    %613 = vmatprep.subr.mxu0 0.0
    %614 = vmatpush1.msra.mxu0 0.0
    %615 = vmatprep.subr.mxu0 0.0
    %616 = vmatpush1.msra.mxu0 0.0
    %617 = vmatprep.subr.mxu0 0.0
    %618 = vmatpush1.msra.mxu0 0.0
    %619 = vmatprep.subr.mxu0 0.0
    %620 = vmatpush1.msra.mxu0 0.0
    %621 = vmatprep.subr.mxu0 0.0
    %622 = vmatpush1.msra.mxu0 0.0
    %623 = vmatprep.subr.mxu0 0.0
    %624 = vmatpush1.msra.mxu0 0.0
    %625 = vmatprep.subr.mxu0 0.0
    %626 = vmatpush1.msra.mxu0 0.0
    %627 = vmatprep.subr.mxu0 0.0
    %628 = vmatpush1.msra.mxu0 0.0
    %629 = vmatprep.subr.mxu0 0.0
    %630 = vmatpush1.msra.mxu0 0.0
    %631 = vmatprep.subr.mxu0 0.0
    %632 = vmatpush1.msra.mxu0 0.0
    %633 = vmatprep.subr.mxu0 0.0
    %634 = vmatpush1.msra.mxu0 0.0
    %635 = vmatprep.subr.mxu0 0.0
    %636 = vmatpush1.msra.mxu0 0.0
    %637 = vmatprep.subr.mxu0 0.0
    %638 = vmatpush1.msra.mxu0 0.0
    %639 = vmatprep.subr.mxu0 0.0
    %640 = vmatpush1.msra.mxu0 0.0
    %641 = vmatprep.subr.mxu0 0.0
    %642 = vmatpush1.msra.mxu0 0.0
    %643 = vmatprep.subr.mxu0 0.0
    %644 = vmatpush1.msra.mxu0 0.0
    %645 = vmatprep.subr.mxu0 0.0
    %646 = vmatpush1.msra.mxu0 0.0
    %647 = vmatprep.subr.mxu0 0.0
    %648 = vmatpush1.msra.mxu0 0.0
    %649 = vmatprep.subr.mxu0 0.0
    %650 = vmatpush1.msra.mxu0 0.0
    %651 = vmatprep.subr.mxu0 0.0
    %652 = vmatpush1.msra.mxu0 0.0
    %653 = vmatprep.subr.mxu0 0.0
    %654 = vmatpush1.msra.mxu0 0.0
    %655 = vmatprep.subr.mxu0 0.0
    %656 = vmatpush1.msra.mxu0 0.0
    %657 = vmatprep.subr.mxu0 0.0
    %658 = vmatpush1.msra.mxu0 0.0
    %659 = vmatprep.mubr.f32.mxu0 0.0
    %660 = vmatmul.mubr.f32.gmra.mrb[0].mxu0 %v593
    %v661 = vpop.f32.mrb[0].mxu0
    %v662 = vadd.f32 0.0, %v661
    %v663 = vpop.f32.mrb[0].mxu0
    %v664 = vadd.f32 0.0, %v663
    %665 = vdwg.mxu0
    %v666 = vadd.f32 %v664, %v49
    %v667 = vxor.u32 %v666, 2147483648
    %v668 = vmul.f32 %v667, 1.442695
    %v669 = vpow.pop %v668
    %v670 = vadd.f32 %v669, 1.0
    %v671 = vrcp.pop %v670
    %v672 = vmul.f32 1.0, %v671
    %v673 = vtanh.pop %v666
    %v674 = vmul.f32 %v672, %v551
    %676 = vrot.lane.b32.xlu0 %v673, 32
    %v677 = vpop.permute.xlu0 %676
    %v679 = vmul.f32 %v672, %v677
    %681 = vrot.lane.b32.xlu0 %v679, 32
    %v682 = vpop.permute.xlu0 %681
    %v684 = vadd.f32 %v674, %v682
    %v685 = vtanh.pop %v684
    %687 = vrot.lane.b32.xlu0 %v685, 32
    %v688 = vpop.permute.xlu0 %687
    %v690 = vmul.f32 %v672, %v688
    %v691 = vadd.f32 %v662, %v159
    %v692 = vxor.u32 %v691, 2147483648
    %v693 = vmul.f32 %v692, 1.442695
    %v694 = vpow.pop %v693
    %v695 = vadd.f32 %v694, 1.0
    %v696 = vrcp.pop %v695
    %v697 = vmul.f32 1.0, %v696
    %v698 = vtanh.pop %v691
    %v699 = vmul.f32 %v697, %v576
    %701 = vrot.lane.b32.xlu0 %v698, 32
    %v702 = vpop.permute.xlu0 %701
    %v704 = vmul.f32 %v697, %v702
    %706 = vrot.lane.b32.xlu0 %v704, 32
    %v707 = vpop.permute.xlu0 %706
    %v709 = vadd.f32 %v699, %v707
    %v710 = vtanh.pop %v709
    %712 = vrot.lane.b32.xlu0 %v710, 32
    %v713 = vpop.permute.xlu0 %712
    %v715 = vmul.f32 %v697, %v713
    %717 = vrot.lane.b32.xlu0 %v715, 64
    %v718 = vpop.permute.xlu0 %717
    %721 = vrot.lane.b32.xlu0 %v690, 96
    %v722 = vpop.permute.xlu0 %721
    %v724 = vsel %vm190, %v718, %v722
    %v726 = vsel %vm192, %v724, 0
    %728 = vmatprep.subr.mxu0 %v29
    %729 = vmatpush1.msra.mxu0 %v28
    %730 = vmatprep.subr.mxu0 %v31
    %731 = vmatpush1.msra.mxu0 %v30
    %732 = vmatprep.subr.mxu0 %v33
    %733 = vmatpush1.msra.mxu0 %v32
    %734 = vmatprep.subr.mxu0 %v35
    %735 = vmatpush1.msra.mxu0 %v34
    %736 = vmatprep.subr.mxu0 %v37
    %737 = vmatpush1.msra.mxu0 %v36
    %738 = vmatprep.subr.mxu0 %v39
    %739 = vmatpush1.msra.mxu0 %v38
    %740 = vmatprep.subr.mxu0 %v41
    %741 = vmatpush1.msra.mxu0 %v40
    %742 = vmatprep.subr.mxu0 %v43
    %743 = vmatpush1.msra.mxu0 %v42
    %744 = vmatprep.subr.mxu0 0.0
    %745 = vmatpush1.msra.mxu0 0.0
    %746 = vmatprep.subr.mxu0 0.0
    %747 = vmatpush1.msra.mxu0 0.0
    %748 = vmatprep.subr.mxu0 0.0
    %749 = vmatpush1.msra.mxu0 0.0
    %750 = vmatprep.subr.mxu0 0.0
    %751 = vmatpush1.msra.mxu0 0.0
    %752 = vmatprep.subr.mxu0 0.0
    %753 = vmatpush1.msra.mxu0 0.0
    %754 = vmatprep.subr.mxu0 0.0
    %755 = vmatpush1.msra.mxu0 0.0
    %756 = vmatprep.subr.mxu0 0.0
    %757 = vmatpush1.msra.mxu0 0.0
    %758 = vmatprep.subr.mxu0 0.0
    %759 = vmatpush1.msra.mxu0 0.0
    %760 = vmatprep.subr.mxu0 0.0
    %761 = vmatpush1.msra.mxu0 0.0
    %762 = vmatprep.subr.mxu0 0.0
    %763 = vmatpush1.msra.mxu0 0.0
    %764 = vmatprep.subr.mxu0 0.0
    %765 = vmatpush1.msra.mxu0 0.0
    %766 = vmatprep.subr.mxu0 0.0
    %767 = vmatpush1.msra.mxu0 0.0
    %768 = vmatprep.subr.mxu0 0.0
    %769 = vmatpush1.msra.mxu0 0.0
    %770 = vmatprep.subr.mxu0 0.0
    %771 = vmatpush1.msra.mxu0 0.0
    %772 = vmatprep.subr.mxu0 0.0
    %773 = vmatpush1.msra.mxu0 0.0
    %774 = vmatprep.subr.mxu0 0.0
    %775 = vmatpush1.msra.mxu0 0.0
    %776 = vmatprep.subr.mxu0 0.0
    %777 = vmatpush1.msra.mxu0 0.0
    %778 = vmatprep.subr.mxu0 0.0
    %779 = vmatpush1.msra.mxu0 0.0
    %780 = vmatprep.subr.mxu0 0.0
    %781 = vmatpush1.msra.mxu0 0.0
    %782 = vmatprep.subr.mxu0 0.0
    %783 = vmatpush1.msra.mxu0 0.0
    %784 = vmatprep.subr.mxu0 0.0
    %785 = vmatpush1.msra.mxu0 0.0
    %786 = vmatprep.subr.mxu0 0.0
    %787 = vmatpush1.msra.mxu0 0.0
    %788 = vmatprep.subr.mxu0 0.0
    %789 = vmatpush1.msra.mxu0 0.0
    %790 = vmatprep.subr.mxu0 0.0
    %791 = vmatpush1.msra.mxu0 0.0
    %792 = vmatprep.mubr.f32.mxu0 0.0
    %793 = vmatmul.mubr.f32.gmra.mrb[0].mxu0 %v726
    %v794 = vpop.f32.mrb[0].mxu0
    %v795 = vpop.f32.mrb[0].mxu0
    %v796 = vadd.f32 0.0, %v795
    %797 = vdwg.mxu0
    %v798 = vadd.f32 %v796, %v49
    %v799 = vxor.u32 %v798, 2147483648
    %v800 = vmul.f32 %v799, 1.442695
    %v801 = vpow.pop %v800
    %v802 = vadd.f32 %v801, 1.0
    %v803 = vrcp.pop %v802
    %v804 = vmul.f32 1.0, %v803
    %v805 = vtanh.pop %v798
    %v806 = vmul.f32 %v804, %v684
    %808 = vrot.lane.b32.xlu0 %v805, 32
    %v809 = vpop.permute.xlu0 %808
    %v811 = vmul.f32 %v804, %v809
    %813 = vrot.lane.b32.xlu0 %v811, 32
    %v814 = vpop.permute.xlu0 %813
    %v816 = vadd.f32 %v806, %v814
    %v817 = vtanh.pop %v816
    %819 = vrot.lane.b32.xlu0 %v817, 32
    %v820 = vpop.permute.xlu0 %819
    %v822 = vmul.f32 %v804, %v820
    %824 = vrot.lane.b32.xlu0 %v822, 64
    %v825 = vpop.permute.xlu0 %824
    %v826 = vsel %vm190, %v825, 0
    %828 = vmatprep.subr.mxu0 0.0
    %829 = vmatpush1.msra.mxu0 %v44
    %830 = vmatprep.subr.mxu0 0.0
    %831 = vmatpush1.msra.mxu0 %v45
    %832 = vmatprep.subr.mxu0 0.0
    %833 = vmatpush1.msra.mxu0 %v46
    %834 = vmatprep.subr.mxu0 0.0
    %835 = vmatpush1.msra.mxu0 %v47
    %836 = vmatprep.subr.mxu0 0.0
    %837 = vmatpush1.msra.mxu0 0.0
    %838 = vmatprep.subr.mxu0 0.0
    %839 = vmatpush1.msra.mxu0 0.0
    %840 = vmatprep.subr.mxu0 0.0
    %841 = vmatpush1.msra.mxu0 0.0
    %842 = vmatprep.subr.mxu0 0.0
    %843 = vmatpush1.msra.mxu0 0.0
    %844 = vmatprep.subr.mxu0 0.0
    %845 = vmatpush1.msra.mxu0 0.0
    %846 = vmatprep.subr.mxu0 0.0
    %847 = vmatpush1.msra.mxu0 0.0
    %848 = vmatprep.subr.mxu0 0.0
    %849 = vmatpush1.msra.mxu0 0.0
    %850 = vmatprep.subr.mxu0 0.0
    %851 = vmatpush1.msra.mxu0 0.0
    %852 = vmatprep.subr.mxu0 0.0
    %853 = vmatpush1.msra.mxu0 0.0
    %854 = vmatprep.subr.mxu0 0.0
    %855 = vmatpush1.msra.mxu0 0.0
    %856 = vmatprep.subr.mxu0 0.0
    %857 = vmatpush1.msra.mxu0 0.0
    %858 = vmatprep.subr.mxu0 0.0
    %859 = vmatpush1.msra.mxu0 0.0
    %860 = vmatprep.subr.mxu0 0.0
    %861 = vmatpush1.msra.mxu0 0.0
    %862 = vmatprep.subr.mxu0 0.0
    %863 = vmatpush1.msra.mxu0 0.0
    %864 = vmatprep.subr.mxu0 0.0
    %865 = vmatpush1.msra.mxu0 0.0
    %866 = vmatprep.subr.mxu0 0.0
    %867 = vmatpush1.msra.mxu0 0.0
    %868 = vmatprep.subr.mxu0 0.0
    %869 = vmatpush1.msra.mxu0 0.0
    %870 = vmatprep.subr.mxu0 0.0
    %871 = vmatpush1.msra.mxu0 0.0
    %872 = vmatprep.subr.mxu0 0.0
    %873 = vmatpush1.msra.mxu0 0.0
    %874 = vmatprep.subr.mxu0 0.0
    %875 = vmatpush1.msra.mxu0 0.0
    %876 = vmatprep.subr.mxu0 0.0
    %877 = vmatpush1.msra.mxu0 0.0
    %878 = vmatprep.subr.mxu0 0.0
    %879 = vmatpush1.msra.mxu0 0.0
    %880 = vmatprep.subr.mxu0 0.0
    %881 = vmatpush1.msra.mxu0 0.0
    %882 = vmatprep.subr.mxu0 0.0
    %883 = vmatpush1.msra.mxu0 0.0
    %884 = vmatprep.subr.mxu0 0.0
    %885 = vmatpush1.msra.mxu0 0.0
    %886 = vmatprep.subr.mxu0 0.0
    %887 = vmatpush1.msra.mxu0 0.0
    %888 = vmatprep.subr.mxu0 0.0
    %889 = vmatpush1.msra.mxu0 0.0
    %890 = vmatprep.subr.mxu0 0.0
    %891 = vmatpush1.msra.mxu0 0.0
    %892 = vmatprep.mubr.f32.mxu0 0.0
    %893 = vmatmul.mubr.f32.gmra.mrb[0].mxu0 %v826
    %v894 = vpop.f32.mrb[0].mxu0
    %v895 = vadd.f32 %v50, %v894
    %v896 = vpop.f32.mrb[0].mxu0
    %897 = vdwg.mxu0
    %vm898 = vcmask 64512
    %899 = vst.msk [vmem:[#allocation5] sm:$0xff] %vm898, %v895
    // Predicated region
    $region14: #{tpu_custom_call.1} parent=1 // pred_check
      _
    $region15: #{tpu_custom_call.1} parent=1 // pred_check_branch
      %901 = sbr.rel (0) target = $region17
    $region16: #{tpu_custom_call.1} parent=1 // pred_region
      %s903 = ssub.s32 128, 128
      %904 = vsyncadd [#allocation4], %s903
      %s906 = sshll.u32 [#allocation5], 4
      %s907 = int_to_ptr.vmem [resolvable:$true] %s906
      %909 = dma.vmem_to_hbm [thread:$0]  %s907, 128, %s2, [#allocation4]
    $region17: #{tpu_custom_call.1} parent=1 // pred_fallthru
      _
    // Predicated region
    $region18: #{tpu_custom_call.1} parent=1 // pred_check
      _
    $region19: #{tpu_custom_call.1} parent=1 // pred_check_branch
      %911 = sbr.rel (0) target = $region21
    $region20: #{tpu_custom_call.1} parent=1 // pred_region
      %912 = dma.done [#allocation4], 128
    $region21: #{tpu_custom_call.1} parent=1 // pred_fallthru
      _
    %913 = vsyncpa [#allocation3], 1
    %914 = vsyncpa [#allocation4], 1

</llo_original>
